<compile_context>
chip_gen: v5e
topology: v5e:2x2
jax: 0.10.0
libtpu: 0.0.40
codegen_flags: <defaults>
</compile_context>

<pallas_src>
import jax
import jax.numpy as jnp
from jax import lax
from jax.experimental import pallas as pl
from jax.experimental.pallas import tpu as pltpu

EPS = 1e-5
_VMEM_LIMIT_BYTES = 64 * 1024 * 1024          # fits v5e/v6e (128 MiB) and v7x (64 MiB)
_TARGET_BLOCK_BYTES = 2 * 1024 * 1024         # ~2 MiB of x per grid step
_MAX_LANE_TILE = 2048


def _round_down(x, m):
    return max((x // m) * m, m)


def _sublane_unit(dtype):
    return {4: 8, 2: 16, 1: 32}.get(jnp.dtype(dtype).itemsize, 8)


def _choose_tiles(nc, tv, dtype):
    """Pick (TILE_R, TILE_L) for the flattened (N*C, T*V) view."""
    sub = _sublane_unit(dtype)
    itemsize = jnp.dtype(dtype).itemsize
    tile_l = tv if tv <= _MAX_LANE_TILE else _round_down(_MAX_LANE_TILE, 128)
    want_r = max(_TARGET_BLOCK_BYTES // (tile_l * itemsize), sub)
    tile_r = nc if nc <= want_r else _round_down(want_r, sub)
    # v7x megacore friendliness: prefer >= 2 grid steps when the data allows it.
    if pl.cdiv(nc, tile_r) * pl.cdiv(tv, tile_l) == 1 and nc >= 2 * sub:
        tile_r = _round_down(pl.cdiv(nc, 2), sub)
    return tile_r, tile_l


def _channel_stats(x2, d2, nc, tv, tile_r, tile_l):
    """Single HBM pass over x: per-row sum and sum-of-squares of h = x * diag (f32)."""
    lane_ragged = (tv % tile_l) != 0
    grid = (pl.cdiv(nc, tile_r), pl.cdiv(tv, tile_l))

    def kernel(x_ref, d_ref, sum_ref, sq_ref):
        @pl.when(pl.program_id(1) == 0)
        def _():
            sum_ref[...] = jnp.zeros_like(sum_ref)
            sq_ref[...] = jnp.zeros_like(sq_ref)

        h = x_ref[...].astype(jnp.float32) * d_ref[...]         # (TILE_R, TILE_L)
        if lane_ragged:
            # Padded lanes of the last lane tile must not pollute the row sums.
            lane = (pl.program_id(1) * tile_l
                    + lax.broadcasted_iota(jnp.int32, h.shape, 1))
            h = jnp.where(lane < tv, h, 0.0)
        sum_ref[...] += jnp.sum(h, axis=1, keepdims=True)
        sq_ref[...] += jnp.sum(h * h, axis=1, keepdims=True)

    return pl.pallas_call(
        kernel,
        out_shape=(jax.ShapeDtypeStruct((nc, 1), jnp.float32),
                   jax.ShapeDtypeStruct((nc, 1), jnp.float32)),
        grid=grid,
        in_specs=[
            pl.BlockSpec((tile_r, tile_l), lambda i, j: (i, j)),   # x tile (native dtype)
            pl.BlockSpec((1, tile_l), lambda i, j: (0, j)),        # diag tile (f32)
        ],
        out_specs=(pl.BlockSpec((tile_r, 1), lambda i, j: (i, 0)),
                   pl.BlockSpec((tile_r, 1), lambda i, j: (i, 0))),
        compiler_params=pltpu.CompilerParams(
            dimension_semantics=("parallel", "arbitrary"),
            vmem_limit_bytes=_VMEM_LIMIT_BYTES),
    )(x2, d2)


def _apply_pass(x2, d2, scale_rows, shift_rows, nc, tv, tile_r, tile_l):
    """Elementwise pass: out = relu((x*diag)*scale + shift) + x, native-dtype I/O."""
    grid = (pl.cdiv(nc, tile_r), pl.cdiv(tv, tile_l))

    def kernel(x_ref, d_ref, scale_ref, shift_ref, o_ref):
        x = x_ref[...].astype(jnp.float32)                        # (TILE_R, TILE_L)
        h = x * d_ref[...]                                        # diag broadcast (1, L)
        hn = h * scale_ref[...] + shift_ref[...]                  # BN affine (R, 1)
        o_ref[...] = (jnp.maximum(hn, 0.0) + x).astype(o_ref.dtype)

    return pl.pallas_call(
        kernel,
        out_shape=jax.ShapeDtypeStruct((nc, tv), x2.dtype),
        grid=grid,
        in_specs=[
            pl.BlockSpec((tile_r, tile_l), lambda i, j: (i, j)),   # x tile
            pl.BlockSpec((1, tile_l), lambda i, j: (0, j)),        # diag tile
            pl.BlockSpec((tile_r, 1), lambda i, j: (i, 0)),        # scale rows
            pl.BlockSpec((tile_r, 1), lambda i, j: (i, 0)),        # shift rows
        ],
        out_specs=pl.BlockSpec((tile_r, tile_l), lambda i, j: (i, j)),
        compiler_params=pltpu.CompilerParams(
            dimension_semantics=("parallel", "parallel"),
            vmem_limit_bytes=_VMEM_LIMIT_BYTES),
    )(x2, d2, scale_rows, shift_rows)


def graph_convolution_forward(x, adj, gamma, beta, *, tile_r=None, tile_l=None):
    """x: (N, C, T, V), adj: (T, V, V), gamma/beta: (C,). Returns (N, C, T, V), x.dtype."""
    n, c, t, v = x.shape
    nc, tv = n * c, t * v

    # Tiny adjacency diagonal (== einsum('nctp,tpp->nctp') factor), kept un-broadcast.
    diag = jnp.diagonal(adj.astype(jnp.float32), axis1=1, axis2=2)        # (T, V)
    d2 = diag.reshape(1, tv)

    x2 = x.reshape(nc, tv)                      # free reshape, native dtype & layout
    auto_r, auto_l = _choose_tiles(nc, tv, x.dtype)
    tile_r = auto_r if tile_r is None else tile_r
    tile_l = auto_l if tile_l is None else tile_l

    # Pass 1: single read of x -> per-(n,c) sum / sumsq of h.
    row_sum, row_sq = _channel_stats(x2, d2, nc, tv, tile_r, tile_l)

    # Fold BN (training-mode, biased var) into per-channel scale/shift (tiny arrays).
    cnt = jnp.float32(n * t * v)
    sum_c = row_sum.reshape(n, c).sum(axis=0)
    sq_c = row_sq.reshape(n, c).sum(axis=0)
    mean = sum_c / cnt
    var = jnp.maximum(sq_c / cnt - mean * mean, 0.0)
    inv = lax.rsqrt(var + EPS)
    scale_c = gamma.astype(jnp.float32) * inv                              # (C,)
    shift_c = beta.astype(jnp.float32) - mean * scale_c                    # (C,)
    scale_rows = jnp.broadcast_to(scale_c[None, :], (n, c)).reshape(nc, 1)
    shift_rows = jnp.broadcast_to(shift_c[None, :], (n, c)).reshape(nc, 1)

    # Pass 2: read x, write out (native dtype).
    out2 = _apply_pass(x2, d2, scale_rows, shift_rows, nc, tv, tile_r, tile_l)
    return out2.reshape(n, c, t, v)


def reference_forward(x, adj, gamma, beta):
    """Pure-JAX f32 reference mirroring the PyTorch forward (training-mode BN)."""
    x = x.astype(jnp.float32)
    adj = adj.astype(jnp.float32)
    n, c, t, v = x.shape
    out = jnp.einsum('nctp,tpp->nctp', x, adj)
    h = out.transpose(0, 2, 1, 3).reshape(n * t, c, v)
    mean = h.mean(axis=(0, 2), keepdims=True)
    var = ((h - mean) ** 2).mean(axis=(0, 2), keepdims=True)
    hn = (h - mean) / jnp.sqrt(var + EPS) * gamma.reshape(1, c, 1) + beta.reshape(1, c, 1)
    hn = jnp.maximum(hn, 0.0)
    return hn.reshape(n, t, c, v).transpose(0, 2, 1, 3) + x


def _check(key, n, c, t, v, dtype, atol, rtol, tile_r=None, tile_l=None):
    kx, ka = jax.random.split(key)
    x = jax.random.normal(kx, (n, c, t, v), dtype=jnp.float32).astype(dtype)
    adj = jax.random.uniform(ka, (t, v, v), dtype=jnp.float32)
    # BatchNorm1d(C) default affine init: weight=1, bias=0.  self.weight (in_f, out_f)
    # is allocated by the module but never used in forward, so it is omitted.
    gamma = jnp.ones((c,), dtype=jnp.float32)
    beta = jnp.zeros((c,), dtype=jnp.float32)

    out = graph_convolution_forward(x, adj, gamma, beta, tile_r=tile_r, tile_l=tile_l)
    out = jax.block_until_ready(out)
    ref = reference_forward(x, adj, gamma, beta)
    assert out.shape == (n, c, t, v)
    assert out.dtype == x.dtype, f"dtype mismatch: {out.dtype} vs {x.dtype}"
    assert jnp.allclose(out.astype(jnp.float32), ref, atol=atol, rtol=rtol), \
        "mismatch vs reference"


if __name__ == "__main__":
    key = jax.random.PRNGKey(0)
    k1, k2, k3 = jax.random.split(key, 3)

    # Small shape consistent with the module: N=2, C=4, T=8, V=16 (single-tile path).
    _check(k1, n=2, c=4, t=8, v=16, dtype=jnp.float32, atol=1e-4, rtol=1e-4)

    # Multi-row-tile + ragged lane tile path (forced tiles): N*C=16 rows, T*V=640,
    # tile_r=8 -> 2 row tiles, tile_l=512 -> ragged last lane tile (masked stats).
    _check(k2, n=2, c=8, t=20, v=32, dtype=jnp.float32, atol=1e-4, rtol=1e-4,
           tile_r=8, tile_l=512)

    # Native-dtype I/O path: bf16 in, bf16 out, f32 math/stats inside the kernels.
    _check(k3, n=2, c=8, t=20, v=32, dtype=jnp.bfloat16, atol=5e-2, rtol=5e-2,
           tile_l=512)

    print("KERNEL_OK")
</pallas_src>

<mosaic_0001>
module attributes {stable_mosaic.version = 11 : i64} {
  func.func @kernel(%arg0: i32, %arg1: i32, %arg2: memref<8x128xf32, #tpu.memory_space<vmem>>, %arg3: memref<1x128xf32, #tpu.memory_space<vmem>>, %arg4: memref<8x1xf32, #tpu.memory_space<vmem>>, %arg5: memref<8x1xf32, #tpu.memory_space<vmem>>) attributes {dimension_semantics = [#tpu.dimension_semantics<parallel>, #tpu.dimension_semantics<arbitrary>], iteration_bounds = array<i64: 1, 1>, scalar_prefetch = 0 : i64, scratch_operands = 0 : i64, tpu.core_type = #tpu.core_type<tc>, window_params = [{transform_indices = @transform_0, window_bounds = array<i64: 8, 128>}, {transform_indices = @transform_1, window_bounds = array<i64: 1, 128>}, {transform_indices = @transform_2, window_bounds = array<i64: 8, 1>}, {transform_indices = @transform_3, window_bounds = array<i64: 8, 1>}]} {
    %c0_i32 = arith.constant 0 : i32
    %0 = arith.cmpi eq, %arg1, %c0_i32 : i32
    %1 = arith.extui %0 : i1 to i32
    %c0_i32_0 = arith.constant 0 : i32
    %2 = arith.cmpi ne, %1, %c0_i32_0 : i32
    scf.if %2 {
      %cst_13 = arith.constant 0.000000e+00 : f32
      %18 = vector.broadcast %cst_13 : f32 to vector<8x1xf32>
      %c0_14 = arith.constant 0 : index
      %c0_15 = arith.constant 0 : index
      %19 = vector.load %arg4[%c0_14, %c0_15] : memref<8x1xf32, #tpu.memory_space<vmem>>, vector<8x1xf32>
      tpu.vector_store %arg4[%c0_14, %c0_15], %18 {strides = array<i32>} : memref<8x1xf32, #tpu.memory_space<vmem>>, vector<8x1xf32>,
      %cst_16 = arith.constant 0.000000e+00 : f32
      %20 = vector.broadcast %cst_16 : f32 to vector<8x1xf32>
      %c0_17 = arith.constant 0 : index
      %c0_18 = arith.constant 0 : index
      %21 = vector.load %arg5[%c0_17, %c0_18] : memref<8x1xf32, #tpu.memory_space<vmem>>, vector<8x1xf32>
      tpu.vector_store %arg5[%c0_17, %c0_18], %20 {strides = array<i32>} : memref<8x1xf32, #tpu.memory_space<vmem>>, vector<8x1xf32>,
    } else {
    }
    %c0 = arith.constant 0 : index
    %c0_1 = arith.constant 0 : index
    %3 = vector.load %arg2[%c0, %c0_1] : memref<8x128xf32, #tpu.memory_space<vmem>>, vector<8x128xf32>
    %c0_2 = arith.constant 0 : index
    %c0_3 = arith.constant 0 : index
    %4 = vector.load %arg3[%c0_2, %c0_3] : memref<1x128xf32, #tpu.memory_space<vmem>>, vector<1x128xf32>
    %5 = vector.broadcast %4 : vector<1x128xf32> to vector<8x128xf32>
    %6 = arith.mulf %3, %5 : vector<8x128xf32>
    %c0_4 = arith.constant 0 : index
    %c0_5 = arith.constant 0 : index
    %7 = vector.load %arg4[%c0_4, %c0_5] : memref<8x1xf32, #tpu.memory_space<vmem>>, vector<8x1xf32>
    %cst = arith.constant dense<0.000000e+00> : vector<8xf32>
    %8 = vector.multi_reduction <add>, %6, %cst [1] : vector<8x128xf32> to vector<8xf32>
    %9 = vector.shape_cast %8 : vector<8xf32> to vector<8x1xf32>
    %10 = arith.addf %7, %9 : vector<8x1xf32>
    %c0_6 = arith.constant 0 : index
    %c0_7 = arith.constant 0 : index
    %11 = vector.load %arg4[%c0_6, %c0_7] : memref<8x1xf32, #tpu.memory_space<vmem>>, vector<8x1xf32>
    tpu.vector_store %arg4[%c0_6, %c0_7], %10 {strides = array<i32>} : memref<8x1xf32, #tpu.memory_space<vmem>>, vector<8x1xf32>,
    %c0_8 = arith.constant 0 : index
    %c0_9 = arith.constant 0 : index
    %12 = vector.load %arg5[%c0_8, %c0_9] : memref<8x1xf32, #tpu.memory_space<vmem>>, vector<8x1xf32>
    %13 = arith.mulf %6, %6 : vector<8x128xf32>
    %cst_10 = arith.constant dense<0.000000e+00> : vector<8xf32>
    %14 = vector.multi_reduction <add>, %13, %cst_10 [1] : vector<8x128xf32> to vector<8xf32>
    %15 = vector.shape_cast %14 : vector<8xf32> to vector<8x1xf32>
    %16 = arith.addf %12, %15 : vector<8x1xf32>
    %c0_11 = arith.constant 0 : index
    %c0_12 = arith.constant 0 : index
    %17 = vector.load %arg5[%c0_11, %c0_12] : memref<8x1xf32, #tpu.memory_space<vmem>>, vector<8x1xf32>
    tpu.vector_store %arg5[%c0_11, %c0_12], %16 {strides = array<i32>} : memref<8x1xf32, #tpu.memory_space<vmem>>, vector<8x1xf32>,
    return
  }
  func.func @transform_0(%arg0: i32, %arg1: i32) -> (i32, i32) {
    %c0_i32 = arith.constant 0 : i32
    return %arg0, %arg1 : i32, i32
  }
  func.func @transform_1(%arg0: i32, %arg1: i32) -> (i32, i32) {
    %c0_i32 = arith.constant 0 : i32
    %c0_i32_0 = arith.constant 0 : i32
    return %c0_i32, %arg1 : i32, i32
  }
  func.func @transform_2(%arg0: i32, %arg1: i32) -> (i32, i32) {
    %c0_i32 = arith.constant 0 : i32
    %c0_i32_0 = arith.constant 0 : i32
    return %arg0, %c0_i32 : i32, i32
  }
  func.func @transform_3(%arg0: i32, %arg1: i32) -> (i32, i32) {
    %c0_i32 = arith.constant 0 : i32
    %c0_i32_0 = arith.constant 0 : i32
    return %arg0, %c0_i32 : i32, i32
  }
}

</mosaic_0001>

<llo_original>
// kernel: tpu_custom_call.1
$region0: #{tpu_custom_call.1}
  #allocation0 [shape = 'u32[]', space=smem, size = 0x4, offset = 0x4, fixed_abs, tag = 'smem constant byte address 0x4 - core index']
  #allocation1 [shape = 'u32[72,128]{1,0:T(1,128)}', space=vmem, size = 0x9000, scoped, tag = 'internal scratch']
  %s0 = inlined_call_operand.hbm [shape: f32[8,128], index: 0, kind: input, shape index: {}]
  %s1 = inlined_call_operand.hbm [shape: f32[1,128], index: 1, kind: input, shape index: {}]
  %s2 = inlined_call_operand.vmem [shape: f32[8,1], index: 2, kind: output, shape index: {0}]
  %s3 = inlined_call_operand.vmem [shape: f32[8,1], index: 3, kind: output, shape index: {1}]
  %4 = xla_tuple %s2, %s3
  %s5 = sld [smem:[#allocation0]]
  $region38: #{tpu_custom_call.1} parent=0
    _
  %s7 = ssub.s32 1, %s5
  %s8 = scalar_select 0, %s7, %s5
  $region1: #{tpu_custom_call.1} parent=0
    #allocation2 [shape = 'u8[4096]{0}', space=vmem, size = 0x1000, scoped, tag = 'input window, operand 0, single buffered']
    #allocation3 [shape = 's32[1]{0}', space=sflag, size = 0x4, scoped, tag = 'scoped memory for tpu_custom_call.1']
    #allocation4 [shape = 'u8[512]{0}', space=vmem, size = 0x400, scoped, tag = 'input window, operand 1, single buffered']
    #allocation5 [shape = 's32[1]{0}', space=sflag, size = 0x4, scoped, tag = 'scoped memory for tpu_custom_call.1']
    %9 = vsyncpa [#allocation3], 0
    %10 = vsyncpa [#allocation5], 0
    // Predicated region
    $region2: #{tpu_custom_call.1} parent=1 // pred_check
      _
    $region3: #{tpu_custom_call.1} parent=1 // pred_check_branch
      %12 = sbr.rel (0) target = $region5
    $region4: #{tpu_custom_call.1} parent=1 // pred_region
      %14 = vsyncadd [#allocation3], 0
      %s16 = sshll.u32 %s0, 4
      %s17 = int_to_ptr.hbm [resolvable:$true] %s16
      %s18 = sshll.u32 [#allocation2], 4
      %s19 = int_to_ptr.vmem [resolvable:$true] %s18
      %21 = dma.hbm_to_vmem [thread:$0]  %s17, 128, %s19, [#allocation3]
    $region5: #{tpu_custom_call.1} parent=1 // pred_fallthru
      _
    // Predicated region
    $region6: #{tpu_custom_call.1} parent=1 // pred_check
      _
    $region7: #{tpu_custom_call.1} parent=1 // pred_check_branch
      %23 = sbr.rel (0) target = $region9
    $region8: #{tpu_custom_call.1} parent=1 // pred_region
      %25 = vsyncadd [#allocation5], 0
      %s27 = sshll.u32 %s1, 4
      %s28 = int_to_ptr.hbm [resolvable:$true] %s27
      %s29 = sshll.u32 [#allocation4], 4
      %s30 = int_to_ptr.vmem [resolvable:$true] %s29
      %32 = dma.hbm_to_vmem [thread:$0]  %s28, 16, %s30, [#allocation5]
    $region9: #{tpu_custom_call.1} parent=1 // pred_fallthru
      _
    // Predicated region
    $region10: #{tpu_custom_call.1} parent=1 // pred_check
      _
    $region11: #{tpu_custom_call.1} parent=1 // pred_check_branch
      %34 = sbr.rel (0) target = $region13
    $region12: #{tpu_custom_call.1} parent=1 // pred_region
      %36 = dma.done [#allocation3], 128
    $region13: #{tpu_custom_call.1} parent=1 // pred_fallthru
      _
    // Predicated region
    $region14: #{tpu_custom_call.1} parent=1 // pred_check
      _
    $region15: #{tpu_custom_call.1} parent=1 // pred_check_branch
      %38 = sbr.rel (0) target = $region17
    $region16: #{tpu_custom_call.1} parent=1 // pred_region
      %40 = dma.done [#allocation5], 16
    $region17: #{tpu_custom_call.1} parent=1 // pred_fallthru
      _
    %p41 = scmp.eq.s32.totalorder 0, 0
    // Predicated region
    $region18: #{tpu_custom_call.1} parent=1 // pred_check
      %p42 = pneg %p41
    $region19: #{tpu_custom_call.1} parent=1 // pred_check_branch
      %44 = sbr.rel (%p42) target = $region21
    $region20: #{tpu_custom_call.1} parent=1 // pred_region
      %vm45 = vcmask 7168
      %46 = vst.msk [vmem:[%s2] sm:$0xff] %vm45, 0.0
      %47 = vst.msk [vmem:[%s3] sm:$0xff] %vm45, 0.0
    $region21: #{tpu_custom_call.1} parent=1 // pred_fallthru
      _
    %v48 = vld [vmem:[#allocation2] sm:$0xff]
    %v49 = vld [vmem:[#allocation4] sm:$0x1]
    %v51 = vperm.slane %v49, 0
    %v53 = vmul.f32 %v48, %v51
    %v54 = vld [vmem:[%s2] sm:$0xff]
    %55 = vadd.xlane.f32.xlu0 %v53
    %v56 = vpop.xlane.xlu0 %55
    %v57 = vadd.f32 %v54, %v56
    %vm58 = vcmask 7168
    %59 = vst.msk [vmem:[%s2] sm:$0xff] %vm58, %v57
    %v60 = vld [vmem:[%s3] sm:$0xff]
    %v61 = vmul.f32 %v53, %v53
    %62 = vadd.xlane.f32.xlu0 %v61
    %v63 = vpop.xlane.xlu0 %62
    %v64 = vadd.f32 %v60, %v63
    %65 = vst.msk [vmem:[%s3] sm:$0xff] %vm58, %v64
    // Predicated region
    $region22: #{tpu_custom_call.1} parent=1 // pred_check
      _
    $region23: #{tpu_custom_call.1} parent=1 // pred_check_branch
      %67 = sbr.rel (0) target = $region25
    $region24: #{tpu_custom_call.1} parent=1 // pred_region
      _
    $region25: #{tpu_custom_call.1} parent=1 // pred_fallthru
      _
    // Predicated region
    $region26: #{tpu_custom_call.1} parent=1 // pred_check
      _
    $region27: #{tpu_custom_call.1} parent=1 // pred_check_branch
      %69 = sbr.rel (0) target = $region29
    $region28: #{tpu_custom_call.1} parent=1 // pred_region
      _
    $region29: #{tpu_custom_call.1} parent=1 // pred_fallthru
      _
    // Predicated region
    $region30: #{tpu_custom_call.1} parent=1 // pred_check
      _
    $region31: #{tpu_custom_call.1} parent=1 // pred_check_branch
      %71 = sbr.rel (0) target = $region33
    $region32: #{tpu_custom_call.1} parent=1 // pred_region
      _
    $region33: #{tpu_custom_call.1} parent=1 // pred_fallthru
      _
    // Predicated region
    $region34: #{tpu_custom_call.1} parent=1 // pred_check
      _
    $region35: #{tpu_custom_call.1} parent=1 // pred_check_branch
      %73 = sbr.rel (0) target = $region37
    $region36: #{tpu_custom_call.1} parent=1 // pred_region
      _
    $region37: #{tpu_custom_call.1} parent=1 // pred_fallthru
      _
    %74 = vsyncpa [#allocation3], 1
    %75 = vsyncpa [#allocation5], 1

</llo_original>
